<compile_context>
chip_gen: v6e
topology: v6e:2x2x1
jax: 0.10.0
libtpu: 0.0.40
codegen_flags: <defaults>
</compile_context>

<pallas_src>
import numpy as np
import jax
import jax.numpy as jnp
from jax.experimental import pallas as pl
from jax.experimental.pallas import tpu as pltpu


# ----------------------------- kernel ------------------------------------- #

def _conv2_kernel(x_ref, w01_ref, b1_ref, w2_ref, b2_ref, w3_ref, b3_ref,
                  w4_ref, b4_ref, w5_ref, b5_ref, o_ref):
    # x: (TB, H*W) f32; w01 = pool @ conv1 expansion; wK: expanded conv matrices;
    # bK: (1, N) broadcast biases.
    x = x_ref[...]

    # pool(6) + conv1 folded into one matmul, then square
    h = jnp.dot(x, w01_ref[...], preferred_element_type=jnp.float32) + b1_ref[...]
    h = h * h
    # conv2 (1x1) + square
    h = jnp.dot(h, w2_ref[...], preferred_element_type=jnp.float32) + b2_ref[...]
    h = h * h
    # conv3 + square
    h = jnp.dot(h, w3_ref[...], preferred_element_type=jnp.float32) + b3_ref[...]
    h = h * h
    # conv4 (1x1) + square
    h = jnp.dot(h, w4_ref[...], preferred_element_type=jnp.float32) + b4_ref[...]
    h = h * h
    # conv5 -> logits (spatial is 1x1, so flat = channel axis)
    logits = jnp.dot(h, w5_ref[...], preferred_element_type=jnp.float32) + b5_ref[...]

    # log_softmax over channels (stable)
    m = jnp.max(logits, axis=-1, keepdims=True)
    s = logits - m
    lse = jnp.log(jnp.sum(jnp.exp(s), axis=-1, keepdims=True))
    o_ref[...] = (s - lse).astype(o_ref.dtype)


# ----------------------- conv / pool -> matmul expansion ------------------- #

def _conv_as_matmul(w, b, in_shape):
    """Expand a stride-1 VALID Conv2d into an exact dense linear map.

    w: (C_out, C_in, KH, KW), b: (C_out,), in_shape: (C_in, H, W)
    Returns (W_e, b_e, out_shape) with W_e: (C_in*H*W, C_out*Ho*Wo), b_e: (1, C_out*Ho*Wo)
    such that conv(x).reshape(-1) == x.reshape(-1) @ W_e + b_e  (row-major C,H,W).
    """
    C_in, H, W = in_shape
    C_out, _, KH, KW = w.shape
    Ho, Wo = H - KH + 1, W - KW + 1
    n_in = C_in * H * W
    eye = jnp.eye(n_in, dtype=jnp.float32).reshape(n_in, C_in, H, W)
    cols = jax.lax.conv_general_dilated(
        eye, w.astype(jnp.float32), window_strides=(1, 1), padding="VALID",
        dimension_numbers=("NCHW", "OIHW", "NCHW"))      # (n_in, C_out, Ho, Wo)
    w_e = cols.reshape(n_in, C_out * Ho * Wo)
    b_e = jnp.broadcast_to(b.astype(jnp.float32)[:, None, None],
                           (C_out, Ho, Wo)).reshape(1, C_out * Ho * Wo)
    return w_e, b_e, (C_out, Ho, Wo)


def _avg_pool_matrix(H, W, k):
    """(H*W, Hp*Wp) matrix implementing avg_pool2d(kernel=k, stride=k), floor mode."""
    Hp, Wp = H // k, W // k
    P = np.zeros((H * W, Hp * Wp), np.float32)
    inv = 1.0 / float(k * k)
    for ph in range(Hp):
        for pw in range(Wp):
            for dh in range(k):
                for dw in range(k):
                    P[(ph * k + dh) * W + (pw * k + dw), ph * Wp + pw] = inv
    return jnp.asarray(P)


def _round_up(n, m):
    return pl.cdiv(n, m) * m


def _pick_batch_tile(B, tb):
    """Batch tile: multiple of 8 (sublane) or exactly B (full-dim block).

    For B > tb use tb (multiple of 256, MXU M dim). For moderate B split into
    at least two tiles so v7x's two TensorCores both get work via
    dimension_semantics=("parallel",). For tiny B use one full-batch tile.
    """
    if B > tb:
        return int(tb)
    half = int(_round_up(pl.cdiv(B, 2), 8))
    if half < B:
        return half          # >= 2 grid steps
    return int(B)            # single tile; block dim equals full array dim


# ------------------------------ wrapper ------------------------------------ #

def classical_conv2(x, params, *, tb=2048):
    """Forward pass of ClassicalConv2. x: (B, 1, H, W) f32 -> (B, 10) log-probs."""
    w1, b1, w2, b2, w3, b3, w4, b4, w5, b5 = params
    B, C, H, W = x.shape
    assert C == 1, "ClassicalConv2 expects a single input channel"

    k = 6
    Hp, Wp = H // k, W // k
    P = _avg_pool_matrix(H, W, k)                                # (H*W, Hp*Wp)
    w1e, b1e, s1 = _conv_as_matmul(w1, b1, (1, Hp, Wp))
    w2e, b2e, s2 = _conv_as_matmul(w2, b2, s1)
    w3e, b3e, s3 = _conv_as_matmul(w3, b3, s2)
    w4e, b4e, s4 = _conv_as_matmul(w4, b4, s3)
    w5e, b5e, s5 = _conv_as_matmul(w5, b5, s4)
    assert s5[1] == 1 and s5[2] == 1, "final conv must reduce spatial dims to 1x1"

    # Fold the (linear) average pool into conv1: exact, one fewer matmul/operand.
    w01 = jnp.dot(P, w1e, preferred_element_type=jnp.float32)    # (H*W, n1)

    n_out = w5e.shape[1]                                         # 10
    n_feat = H * W

    # Batch tiling without any wrapper-side padding copy of x: partial last block
    # is handled by Pallas (OOB reads padded, OOB writes dropped; rows independent).
    TB = _pick_batch_tile(B, tb)
    grid = (pl.cdiv(B, TB),)
    x_flat = x.reshape(B, n_feat).astype(jnp.float32)

    def _const_spec(arr):
        return pl.BlockSpec(arr.shape, lambda i: (0, 0))          # resident in VMEM

    mats = (w01, w2e, w3e, w4e, w5e)
    biases = (b1e, b2e, b3e, b4e, b5e)
    flops = 2 * B * sum(int(m.shape[0] * m.shape[1]) for m in mats) + 10 * B * n_out
    bytes_accessed = 4 * (B * n_feat + B * n_out
                          + sum(int(m.size) for m in mats)
                          + sum(int(b.size) for b in biases))
    transcendentals = B * (n_out + 1)

    out = pl.pallas_call(
        _conv2_kernel,
        out_shape=jax.ShapeDtypeStruct((B, n_out), jnp.float32),
        grid_spec=pltpu.PrefetchScalarGridSpec(
            num_scalar_prefetch=0,
            grid=grid,
            in_specs=[
                pl.BlockSpec((TB, n_feat), lambda i: (i, 0)),     # x: pipelined over batch
                _const_spec(w01), _const_spec(b1e),
                _const_spec(w2e), _const_spec(b2e),
                _const_spec(w3e), _const_spec(b3e),
                _const_spec(w4e), _const_spec(b4e),
                _const_spec(w5e), _const_spec(b5e),
            ],
            out_specs=pl.BlockSpec((TB, n_out), lambda i: (i, 0)),
        ),
        compiler_params=pltpu.CompilerParams(
            dimension_semantics=("parallel",),                    # megacore on v7x
            vmem_limit_bytes=48 * 1024 * 1024),                   # TB=2048 x double-buffer
        cost_estimate=pl.CostEstimate(
            flops=int(flops),
            transcendentals=int(transcendentals),
            bytes_accessed=int(bytes_accessed)),
    )(x_flat, w01, b1e, w2e, b2e, w3e, b3e, w4e, b4e, w5e, b5e)

    return out                     # (B, 10) == output.squeeze() of (B, 10, 1, 1)


# ------------------------------ reference / test ---------------------------- #

def _ref_forward(x, params):
    """Pure-JAX reference matching the PyTorch module."""
    w1, b1, w2, b2, w3, b3, w4, b4, w5, b5 = params
    B, _, H, W = x.shape
    k = 6
    Hp, Wp = H // k, W // k
    xp = x[:, :, :Hp * k, :Wp * k].reshape(B, 1, Hp, k, Wp, k).mean(axis=(3, 5))

    def conv(h, w, b):
        y = jax.lax.conv_general_dilated(
            h, w, window_strides=(1, 1), padding="VALID",
            dimension_numbers=("NCHW", "OIHW", "NCHW"))
        return y + b[None, :, None, None]

    h = conv(xp, w1, b1); h = h * h
    h = conv(h, w2, b2); h = h * h
    h = conv(h, w3, b3); h = h * h
    h = conv(h, w4, b4); h = h * h
    logits = conv(h, w5, b5)                            # (B, 10, 1, 1)
    return jax.nn.log_softmax(logits, axis=1).reshape(B, -1)


def init_params(key):
    """PyTorch Conv2d default init: U(-1/sqrt(fan_in), 1/sqrt(fan_in))."""
    def conv_init(k, c_out, c_in, ksz):
        kw, kb = jax.random.split(k)
        lim = 1.0 / float(np.sqrt(c_in * ksz * ksz))
        w = jax.random.uniform(kw, (c_out, c_in, ksz, ksz), jnp.float32, -lim, lim)
        b = jax.random.uniform(kb, (c_out,), jnp.float32, -lim, lim)
        return w, b

    ks = jax.random.split(key, 5)
    w1, b1 = conv_init(ks[0], 4, 1, 2)
    w2, b2 = conv_init(ks[1], 4, 4, 1)
    w3, b3 = conv_init(ks[2], 4, 4, 2)
    w4, b4 = conv_init(ks[3], 4, 4, 1)
    w5, b5 = conv_init(ks[4], 10, 4, 2)
    return (w1, b1, w2, b2, w3, b3, w4, b4, w5, b5)


if __name__ == "__main__":
    key = jax.random.PRNGKey(0)
    kx, kp = jax.random.split(key)
    # batch=2, MNIST-like single-channel 28x28 input (pool(6) -> 4x4 -> ... -> 1x1)
    x = jax.random.normal(kx, (2, 1, 28, 28), jnp.float32)
    params = init_params(kp)

    out = classical_conv2(x, params)
    jax.block_until_ready(out)

    ref = _ref_forward(x, params)
    assert out.shape == (2, 10), out.shape
    assert jnp.allclose(out, ref, atol=1e-4, rtol=1e-4), \
        float(jnp.max(jnp.abs(out - ref)))

    print("KERNEL_OK")
</pallas_src>

<mosaic_0001>
module attributes {stable_mosaic.version = 11 : i64} {
  func.func @_conv2_kernel(%arg0: i32, %arg1: memref<2x784xf32, #tpu.memory_space<vmem>>, %arg2: memref<784x36xf32, #tpu.memory_space<vmem>>, %arg3: memref<1x36xf32, #tpu.memory_space<vmem>>, %arg4: memref<36x36xf32, #tpu.memory_space<vmem>>, %arg5: memref<1x36xf32, #tpu.memory_space<vmem>>, %arg6: memref<36x16xf32, #tpu.memory_space<vmem>>, %arg7: memref<1x16xf32, #tpu.memory_space<vmem>>, %arg8: memref<16x16xf32, #tpu.memory_space<vmem>>, %arg9: memref<1x16xf32, #tpu.memory_space<vmem>>, %arg10: memref<16x10xf32, #tpu.memory_space<vmem>>, %arg11: memref<1x10xf32, #tpu.memory_space<vmem>>, %arg12: memref<2x10xf32, #tpu.memory_space<vmem>>) attributes {dimension_semantics = [#tpu.dimension_semantics<parallel>], iteration_bounds = array<i64: 1>, scalar_prefetch = 0 : i64, scratch_operands = 0 : i64, tpu.core_type = #tpu.core_type<tc>, window_params = [{transform_indices = @transform_0, window_bounds = array<i64: 2, 784>}, {pipeline_mode = #tpu.pipeline_mode<synchronous>, transform_indices = @transform_1, window_bounds = array<i64: 784, 36>}, {pipeline_mode = #tpu.pipeline_mode<synchronous>, transform_indices = @transform_2, window_bounds = array<i64: 1, 36>}, {pipeline_mode = #tpu.pipeline_mode<synchronous>, transform_indices = @transform_3, window_bounds = array<i64: 36, 36>}, {pipeline_mode = #tpu.pipeline_mode<synchronous>, transform_indices = @transform_4, window_bounds = array<i64: 1, 36>}, {pipeline_mode = #tpu.pipeline_mode<synchronous>, transform_indices = @transform_5, window_bounds = array<i64: 36, 16>}, {pipeline_mode = #tpu.pipeline_mode<synchronous>, transform_indices = @transform_6, window_bounds = array<i64: 1, 16>}, {pipeline_mode = #tpu.pipeline_mode<synchronous>, transform_indices = @transform_7, window_bounds = array<i64: 16, 16>}, {pipeline_mode = #tpu.pipeline_mode<synchronous>, transform_indices = @transform_8, window_bounds = array<i64: 1, 16>}, {pipeline_mode = #tpu.pipeline_mode<synchronous>, transform_indices = @transform_9, window_bounds = array<i64: 16, 10>}, {pipeline_mode = #tpu.pipeline_mode<synchronous>, transform_indices = @transform_10, window_bounds = array<i64: 1, 10>}, {transform_indices = @transform_11, window_bounds = array<i64: 2, 10>}]} {
    %c0 = arith.constant 0 : index
    %c0_0 = arith.constant 0 : index
    %0 = vector.load %arg1[%c0, %c0_0] : memref<2x784xf32, #tpu.memory_space<vmem>>, vector<2x784xf32>
    %c0_1 = arith.constant 0 : index
    %c0_2 = arith.constant 0 : index
    %1 = vector.load %arg2[%c0_1, %c0_2] : memref<784x36xf32, #tpu.memory_space<vmem>>, vector<784x36xf32>
    %cst = arith.constant dense<0.000000e+00> : vector<2x36xf32>
    %2 = tpu.matmul %0, %1, %cst {dimension_numbers = #tpu.dot_dimension_numbers<[1], [0], [0], [1], [0, 0, 1, 1], [], []>} : vector<2x784xf32>, vector<784x36xf32>, vector<2x36xf32> -> vector<2x36xf32>
    %c0_3 = arith.constant 0 : index
    %c0_4 = arith.constant 0 : index
    %3 = vector.load %arg3[%c0_3, %c0_4] : memref<1x36xf32, #tpu.memory_space<vmem>>, vector<1x36xf32>
    %4 = vector.broadcast %3 : vector<1x36xf32> to vector<2x36xf32>
    %5 = arith.addf %2, %4 : vector<2x36xf32>
    %6 = arith.mulf %5, %5 : vector<2x36xf32>
    %c0_5 = arith.constant 0 : index
    %c0_6 = arith.constant 0 : index
    %7 = vector.load %arg4[%c0_5, %c0_6] : memref<36x36xf32, #tpu.memory_space<vmem>>, vector<36x36xf32>
    %cst_7 = arith.constant dense<0.000000e+00> : vector<2x36xf32>
    %8 = tpu.matmul %6, %7, %cst_7 {dimension_numbers = #tpu.dot_dimension_numbers<[1], [0], [0], [1], [0, 0, 1, 1], [], []>} : vector<2x36xf32>, vector<36x36xf32>, vector<2x36xf32> -> vector<2x36xf32>
    %c0_8 = arith.constant 0 : index
    %c0_9 = arith.constant 0 : index
    %9 = vector.load %arg5[%c0_8, %c0_9] : memref<1x36xf32, #tpu.memory_space<vmem>>, vector<1x36xf32>
    %10 = vector.broadcast %9 : vector<1x36xf32> to vector<2x36xf32>
    %11 = arith.addf %8, %10 : vector<2x36xf32>
    %12 = arith.mulf %11, %11 : vector<2x36xf32>
    %c0_10 = arith.constant 0 : index
    %c0_11 = arith.constant 0 : index
    %13 = vector.load %arg6[%c0_10, %c0_11] : memref<36x16xf32, #tpu.memory_space<vmem>>, vector<36x16xf32>
    %cst_12 = arith.constant dense<0.000000e+00> : vector<2x16xf32>
    %14 = tpu.matmul %12, %13, %cst_12 {dimension_numbers = #tpu.dot_dimension_numbers<[1], [0], [0], [1], [0, 0, 1, 1], [], []>} : vector<2x36xf32>, vector<36x16xf32>, vector<2x16xf32> -> vector<2x16xf32>
    %c0_13 = arith.constant 0 : index
    %c0_14 = arith.constant 0 : index
    %15 = vector.load %arg7[%c0_13, %c0_14] : memref<1x16xf32, #tpu.memory_space<vmem>>, vector<1x16xf32>
    %16 = vector.broadcast %15 : vector<1x16xf32> to vector<2x16xf32>
    %17 = arith.addf %14, %16 : vector<2x16xf32>
    %18 = arith.mulf %17, %17 : vector<2x16xf32>
    %c0_15 = arith.constant 0 : index
    %c0_16 = arith.constant 0 : index
    %19 = vector.load %arg8[%c0_15, %c0_16] : memref<16x16xf32, #tpu.memory_space<vmem>>, vector<16x16xf32>
    %cst_17 = arith.constant dense<0.000000e+00> : vector<2x16xf32>
    %20 = tpu.matmul %18, %19, %cst_17 {dimension_numbers = #tpu.dot_dimension_numbers<[1], [0], [0], [1], [0, 0, 1, 1], [], []>} : vector<2x16xf32>, vector<16x16xf32>, vector<2x16xf32> -> vector<2x16xf32>
    %c0_18 = arith.constant 0 : index
    %c0_19 = arith.constant 0 : index
    %21 = vector.load %arg9[%c0_18, %c0_19] : memref<1x16xf32, #tpu.memory_space<vmem>>, vector<1x16xf32>
    %22 = vector.broadcast %21 : vector<1x16xf32> to vector<2x16xf32>
    %23 = arith.addf %20, %22 : vector<2x16xf32>
    %24 = arith.mulf %23, %23 : vector<2x16xf32>
    %c0_20 = arith.constant 0 : index
    %c0_21 = arith.constant 0 : index
    %25 = vector.load %arg10[%c0_20, %c0_21] : memref<16x10xf32, #tpu.memory_space<vmem>>, vector<16x10xf32>
    %cst_22 = arith.constant dense<0.000000e+00> : vector<2x10xf32>
    %26 = tpu.matmul %24, %25, %cst_22 {dimension_numbers = #tpu.dot_dimension_numbers<[1], [0], [0], [1], [0, 0, 1, 1], [], []>} : vector<2x16xf32>, vector<16x10xf32>, vector<2x10xf32> -> vector<2x10xf32>
    %c0_23 = arith.constant 0 : index
    %c0_24 = arith.constant 0 : index
    %27 = vector.load %arg11[%c0_23, %c0_24] : memref<1x10xf32, #tpu.memory_space<vmem>>, vector<1x10xf32>
    %28 = vector.broadcast %27 : vector<1x10xf32> to vector<2x10xf32>
    %29 = arith.addf %26, %28 : vector<2x10xf32>
    %cst_25 = arith.constant dense<0xFF800000> : vector<2xf32>
    %30 = vector.multi_reduction <maximumf>, %29, %cst_25 [1] : vector<2x10xf32> to vector<2xf32>
    %31 = vector.shape_cast %30 : vector<2xf32> to vector<2x1xf32>
    %32 = vector.broadcast %31 : vector<2x1xf32> to vector<2x10xf32>
    %33 = arith.subf %29, %32 : vector<2x10xf32>
    %34 = math.exp %33 : vector<2x10xf32>
    %cst_26 = arith.constant dense<0.000000e+00> : vector<2xf32>
    %35 = vector.multi_reduction <add>, %34, %cst_26 [1] : vector<2x10xf32> to vector<2xf32>
    %36 = vector.shape_cast %35 : vector<2xf32> to vector<2x1xf32>
    %37 = math.log %36 : vector<2x1xf32>
    %38 = vector.broadcast %37 : vector<2x1xf32> to vector<2x10xf32>
    %39 = arith.subf %33, %38 : vector<2x10xf32>
    %c0_27 = arith.constant 0 : index
    %c0_28 = arith.constant 0 : index
    %40 = vector.load %arg12[%c0_27, %c0_28] : memref<2x10xf32, #tpu.memory_space<vmem>>, vector<2x10xf32>
    tpu.vector_store %arg12[%c0_27, %c0_28], %39 {strides = array<i32>} : memref<2x10xf32, #tpu.memory_space<vmem>>, vector<2x10xf32>,
    return
  }
  func.func @transform_0(%arg0: i32) -> (i32, i32) {
    %c0_i32 = arith.constant 0 : i32
    %c0_i32_0 = arith.constant 0 : i32
    return %arg0, %c0_i32 : i32, i32
  }
  func.func @transform_1(%arg0: i32) -> (i32, i32) {
    %c0_i32 = arith.constant 0 : i32
    %c0_i32_0 = arith.constant 0 : i32
    %c0_i32_1 = arith.constant 0 : i32
    return %c0_i32, %c0_i32_0 : i32, i32
  }
  func.func @transform_2(%arg0: i32) -> (i32, i32) {
    %c0_i32 = arith.constant 0 : i32
    %c0_i32_0 = arith.constant 0 : i32
    %c0_i32_1 = arith.constant 0 : i32
    return %c0_i32, %c0_i32_0 : i32, i32
  }
  func.func @transform_3(%arg0: i32) -> (i32, i32) {
    %c0_i32 = arith.constant 0 : i32
    %c0_i32_0 = arith.constant 0 : i32
    %c0_i32_1 = arith.constant 0 : i32
    return %c0_i32, %c0_i32_0 : i32, i32
  }
  func.func @transform_4(%arg0: i32) -> (i32, i32) {
    %c0_i32 = arith.constant 0 : i32
    %c0_i32_0 = arith.constant 0 : i32
    %c0_i32_1 = arith.constant 0 : i32
    return %c0_i32, %c0_i32_0 : i32, i32
  }
  func.func @transform_5(%arg0: i32) -> (i32, i32) {
    %c0_i32 = arith.constant 0 : i32
    %c0_i32_0 = arith.constant 0 : i32
    %c0_i32_1 = arith.constant 0 : i32
    return %c0_i32, %c0_i32_0 : i32, i32
  }
  func.func @transform_6(%arg0: i32) -> (i32, i32) {
    %c0_i32 = arith.constant 0 : i32
    %c0_i32_0 = arith.constant 0 : i32
    %c0_i32_1 = arith.constant 0 : i32
    return %c0_i32, %c0_i32_0 : i32, i32
  }
  func.func @transform_7(%arg0: i32) -> (i32, i32) {
    %c0_i32 = arith.constant 0 : i32
    %c0_i32_0 = arith.constant 0 : i32
    %c0_i32_1 = arith.constant 0 : i32
    return %c0_i32, %c0_i32_0 : i32, i32
  }
  func.func @transform_8(%arg0: i32) -> (i32, i32) {
    %c0_i32 = arith.constant 0 : i32
    %c0_i32_0 = arith.constant 0 : i32
    %c0_i32_1 = arith.constant 0 : i32
    return %c0_i32, %c0_i32_0 : i32, i32
  }
  func.func @transform_9(%arg0: i32) -> (i32, i32) {
    %c0_i32 = arith.constant 0 : i32
    %c0_i32_0 = arith.constant 0 : i32
    %c0_i32_1 = arith.constant 0 : i32
    return %c0_i32, %c0_i32_0 : i32, i32
  }
  func.func @transform_10(%arg0: i32) -> (i32, i32) {
    %c0_i32 = arith.constant 0 : i32
    %c0_i32_0 = arith.constant 0 : i32
    %c0_i32_1 = arith.constant 0 : i32
    return %c0_i32, %c0_i32_0 : i32, i32
  }
  func.func @transform_11(%arg0: i32) -> (i32, i32) {
    %c0_i32 = arith.constant 0 : i32
    %c0_i32_0 = arith.constant 0 : i32
    return %arg0, %c0_i32 : i32, i32
  }
}

</mosaic_0001>

<llo_original>
// kernel: tpu_custom_call.1
$region0: #{tpu_custom_call.1}
  #allocation0 [shape = 'u32[]', space=smem, size = 0x4, offset = 0x4, fixed_abs, tag = 'smem constant byte address 0x4 - core index']
  #allocation1 [shape = 'u32[144,128]{1,0:T(1,128)}', space=vmem, size = 0x12000, scoped, tag = 'internal scratch']
  %s0 = inlined_call_operand.vmem [shape: f32[2,784], index: 0, kind: input, shape index: {}]
  %s1 = inlined_call_operand.vmem [shape: f32[784,36], index: 1, kind: input, shape index: {}]
  %s2 = inlined_call_operand.vmem [shape: f32[1,36], index: 2, kind: input, shape index: {}]
  %s3 = inlined_call_operand.vmem [shape: f32[36,36], index: 3, kind: input, shape index: {}]
  %s4 = inlined_call_operand.vmem [shape: f32[1,36], index: 4, kind: input, shape index: {}]
  %s5 = inlined_call_operand.vmem [shape: f32[36,16], index: 5, kind: input, shape index: {}]
  %s6 = inlined_call_operand.vmem [shape: f32[1,16], index: 6, kind: input, shape index: {}]
  %s7 = inlined_call_operand.vmem [shape: f32[16,16], index: 7, kind: input, shape index: {}]
  %s8 = inlined_call_operand.vmem [shape: f32[1,16], index: 8, kind: input, shape index: {}]
  %s9 = inlined_call_operand.vmem [shape: f32[16,10], index: 9, kind: input, shape index: {}]
  %s10 = inlined_call_operand.vmem [shape: f32[1,10], index: 10, kind: input, shape index: {}]
  %s11 = inlined_call_operand.hbm [shape: f32[2,10], index: 11, kind: output, shape index: {}]
  %s12 = sld [smem:[#allocation0]]
  $region54: #{tpu_custom_call.1} parent=0
    _
  %s14 = ssub.s32 1, %s12
  %s15 = scalar_select 0, %s14, %s12
  $region1: #{tpu_custom_call.1} parent=0
    #allocation2 [shape = 'u8[1024]{0}', space=vmem, size = 0x400, scoped, tag = 'output window, operand 0, single buffered']
    #allocation3 [shape = 's32[1]{0}', space=sflag, size = 0x4, scoped, tag = 'scoped memory for tpu_custom_call.1']
    %16 = vsyncpa [#allocation3], 0
    // Predicated region
    $region2: #{tpu_custom_call.1} parent=1 // pred_check
      _
    $region3: #{tpu_custom_call.1} parent=1 // pred_check_branch
      %18 = sbr.rel (0) target = $region5
    $region4: #{tpu_custom_call.1} parent=1 // pred_region
      _
    $region5: #{tpu_custom_call.1} parent=1 // pred_fallthru
      _
    // Predicated region
    $region6: #{tpu_custom_call.1} parent=1 // pred_check
      _
    $region7: #{tpu_custom_call.1} parent=1 // pred_check_branch
      %20 = sbr.rel (0) target = $region9
    $region8: #{tpu_custom_call.1} parent=1 // pred_region
      _
    $region9: #{tpu_custom_call.1} parent=1 // pred_fallthru
      _
    // Predicated region
    $region10: #{tpu_custom_call.1} parent=1 // pred_check
      _
    $region11: #{tpu_custom_call.1} parent=1 // pred_check_branch
      %22 = sbr.rel (0) target = $region13
    $region12: #{tpu_custom_call.1} parent=1 // pred_region
      _
    $region13: #{tpu_custom_call.1} parent=1 // pred_fallthru
      _
    // Predicated region
    $region14: #{tpu_custom_call.1} parent=1 // pred_check
      _
    $region15: #{tpu_custom_call.1} parent=1 // pred_check_branch
      %24 = sbr.rel (0) target = $region17
    $region16: #{tpu_custom_call.1} parent=1 // pred_region
      _
    $region17: #{tpu_custom_call.1} parent=1 // pred_fallthru
      _
    // Predicated region
    $region18: #{tpu_custom_call.1} parent=1 // pred_check
      _
    $region19: #{tpu_custom_call.1} parent=1 // pred_check_branch
      %26 = sbr.rel (0) target = $region21
    $region20: #{tpu_custom_call.1} parent=1 // pred_region
      _
    $region21: #{tpu_custom_call.1} parent=1 // pred_fallthru
      _
    // Predicated region
    $region22: #{tpu_custom_call.1} parent=1 // pred_check
      _
    $region23: #{tpu_custom_call.1} parent=1 // pred_check_branch
      %28 = sbr.rel (0) target = $region25
    $region24: #{tpu_custom_call.1} parent=1 // pred_region
      _
    $region25: #{tpu_custom_call.1} parent=1 // pred_fallthru
      _
    // Predicated region
    $region26: #{tpu_custom_call.1} parent=1 // pred_check
      _
    $region27: #{tpu_custom_call.1} parent=1 // pred_check_branch
      %30 = sbr.rel (0) target = $region29
    $region28: #{tpu_custom_call.1} parent=1 // pred_region
      _
    $region29: #{tpu_custom_call.1} parent=1 // pred_fallthru
      _
    // Predicated region
    $region30: #{tpu_custom_call.1} parent=1 // pred_check
      _
    $region31: #{tpu_custom_call.1} parent=1 // pred_check_branch
      %32 = sbr.rel (0) target = $region33
    $region32: #{tpu_custom_call.1} parent=1 // pred_region
      _
    $region33: #{tpu_custom_call.1} parent=1 // pred_fallthru
      _
    // Predicated region
    $region34: #{tpu_custom_call.1} parent=1 // pred_check
      _
    $region35: #{tpu_custom_call.1} parent=1 // pred_check_branch
      %34 = sbr.rel (0) target = $region37
    $region36: #{tpu_custom_call.1} parent=1 // pred_region
      _
    $region37: #{tpu_custom_call.1} parent=1 // pred_fallthru
      _
    // Predicated region
    $region38: #{tpu_custom_call.1} parent=1 // pred_check
      _
    $region39: #{tpu_custom_call.1} parent=1 // pred_check_branch
      %36 = sbr.rel (0) target = $region41
    $region40: #{tpu_custom_call.1} parent=1 // pred_region
      _
    $region41: #{tpu_custom_call.1} parent=1 // pred_fallthru
      _
    // Predicated region
    $region42: #{tpu_custom_call.1} parent=1 // pred_check
      _
    $region43: #{tpu_custom_call.1} parent=1 // pred_check_branch
      %38 = sbr.rel (0) target = $region45
    $region44: #{tpu_custom_call.1} parent=1 // pred_region
      _
    $region45: #{tpu_custom_call.1} parent=1 // pred_fallthru
      _
    %v39 = vld [vmem:[%s0] sm:$0xff]
    %v40 = vld [vmem:[%s0 + $0x8] sm:$0x3f]
    %v41 = vld [vmem:[%s1] sm:$0xff]
    %v42 = vld [vmem:[%s1 + $0x8] sm:$0xff]
    %v43 = vld [vmem:[%s1 + $0x10] sm:$0xff]
    %v44 = vld [vmem:[%s1 + $0x18] sm:$0xff]
    %v45 = vld [vmem:[%s1 + $0x20] sm:$0xff]
    %v46 = vld [vmem:[%s1 + $0x28] sm:$0xff]
    %v47 = vld [vmem:[%s1 + $0x30] sm:$0xff]
    %v48 = vld [vmem:[%s1 + $0x38] sm:$0xff]
    %v49 = vld [vmem:[%s1 + $0x40] sm:$0xff]
    %v50 = vld [vmem:[%s1 + $0x48] sm:$0xff]
    %v51 = vld [vmem:[%s1 + $0x50] sm:$0xff]
    %v52 = vld [vmem:[%s1 + $0x58] sm:$0xff]
    %v53 = vld [vmem:[%s1 + $0x60] sm:$0xff]
    %v54 = vld [vmem:[%s1 + $0x68] sm:$0xff]
    %v55 = vld [vmem:[%s1 + $0x70] sm:$0xff]
    %v56 = vld [vmem:[%s1 + $0x78] sm:$0xff]
    %v57 = vld [vmem:[%s1 + $0x80] sm:$0xff]
    %v58 = vld [vmem:[%s1 + $0x88] sm:$0xff]
    %v59 = vld [vmem:[%s1 + $0x90] sm:$0xff]
    %v60 = vld [vmem:[%s1 + $0x98] sm:$0xff]
    %v61 = vld [vmem:[%s1 + $0xa0] sm:$0xff]
    %v62 = vld [vmem:[%s1 + $0xa8] sm:$0xff]
    %v63 = vld [vmem:[%s1 + $0xb0] sm:$0xff]
    %v64 = vld [vmem:[%s1 + $0xb8] sm:$0xff]
    %v65 = vld [vmem:[%s1 + $0xc0] sm:$0xff]
    %v66 = vld [vmem:[%s1 + $0xc8] sm:$0xff]
    %v67 = vld [vmem:[%s1 + $0xd0] sm:$0xff]
    %v68 = vld [vmem:[%s1 + $0xd8] sm:$0xff]
    %v69 = vld [vmem:[%s1 + $0xe0] sm:$0xff]
    %v70 = vld [vmem:[%s1 + $0xe8] sm:$0xff]
    %v71 = vld [vmem:[%s1 + $0xf0] sm:$0xff]
    %v72 = vld [vmem:[%s1 + $0xf8] sm:$0xff]
    %v73 = vld [vmem:[%s1 + $0x100] sm:$0xff]
    %v74 = vld [vmem:[%s1 + $0x108] sm:$0xff]
    %v75 = vld [vmem:[%s1 + $0x110] sm:$0xff]
    %v76 = vld [vmem:[%s1 + $0x118] sm:$0xff]
    %v77 = vld [vmem:[%s1 + $0x120] sm:$0xff]
    %v78 = vld [vmem:[%s1 + $0x128] sm:$0xff]
    %v79 = vld [vmem:[%s1 + $0x130] sm:$0xff]
    %v80 = vld [vmem:[%s1 + $0x138] sm:$0xff]
    %v81 = vld [vmem:[%s1 + $0x140] sm:$0xff]
    %v82 = vld [vmem:[%s1 + $0x148] sm:$0xff]
    %v83 = vld [vmem:[%s1 + $0x150] sm:$0xff]
    %v84 = vld [vmem:[%s1 + $0x158] sm:$0xff]
    %v85 = vld [vmem:[%s1 + $0x160] sm:$0xff]
    %v86 = vld [vmem:[%s1 + $0x168] sm:$0xff]
    %v87 = vld [vmem:[%s1 + $0x170] sm:$0xff]
    %v88 = vld [vmem:[%s1 + $0x178] sm:$0xff]
    %v89 = vld [vmem:[%s1 + $0x180] sm:$0xff]
    %v90 = vld [vmem:[%s1 + $0x188] sm:$0xff]
    %v91 = vld [vmem:[%s1 + $0x190] sm:$0xff]
    %v92 = vld [vmem:[%s1 + $0x198] sm:$0xff]
    %v93 = vld [vmem:[%s1 + $0x1a0] sm:$0xff]
    %v94 = vld [vmem:[%s1 + $0x1a8] sm:$0xff]
    %v95 = vld [vmem:[%s1 + $0x1b0] sm:$0xff]
    %v96 = vld [vmem:[%s1 + $0x1b8] sm:$0xff]
    %v97 = vld [vmem:[%s1 + $0x1c0] sm:$0xff]
    %v98 = vld [vmem:[%s1 + $0x1c8] sm:$0xff]
    %v99 = vld [vmem:[%s1 + $0x1d0] sm:$0xff]
    %v100 = vld [vmem:[%s1 + $0x1d8] sm:$0xff]
    %v101 = vld [vmem:[%s1 + $0x1e0] sm:$0xff]
    %v102 = vld [vmem:[%s1 + $0x1e8] sm:$0xff]
    %v103 = vld [vmem:[%s1 + $0x1f0] sm:$0xff]
    %v104 = vld [vmem:[%s1 + $0x1f8] sm:$0xff]
    %v105 = vld [vmem:[%s1 + $0x200] sm:$0xff]
    %v106 = vld [vmem:[%s1 + $0x208] sm:$0xff]
    %v107 = vld [vmem:[%s1 + $0x210] sm:$0xff]
    %v108 = vld [vmem:[%s1 + $0x218] sm:$0xff]
    %v109 = vld [vmem:[%s1 + $0x220] sm:$0xff]
    %v110 = vld [vmem:[%s1 + $0x228] sm:$0xff]
    %v111 = vld [vmem:[%s1 + $0x230] sm:$0xff]
    %v112 = vld [vmem:[%s1 + $0x238] sm:$0xff]
    %v113 = vld [vmem:[%s1 + $0x240] sm:$0xff]
    %v114 = vld [vmem:[%s1 + $0x248] sm:$0xff]
    %v115 = vld [vmem:[%s1 + $0x250] sm:$0xff]
    %v116 = vld [vmem:[%s1 + $0x258] sm:$0xff]
    %v117 = vld [vmem:[%s1 + $0x260] sm:$0xff]
    %v118 = vld [vmem:[%s1 + $0x268] sm:$0xff]
    %v119 = vld [vmem:[%s1 + $0x270] sm:$0xff]
    %v120 = vld [vmem:[%s1 + $0x278] sm:$0xff]
    %v121 = vld [vmem:[%s1 + $0x280] sm:$0xff]
    %v122 = vld [vmem:[%s1 + $0x288] sm:$0xff]
    %v123 = vld [vmem:[%s1 + $0x290] sm:$0xff]
    %v124 = vld [vmem:[%s1 + $0x298] sm:$0xff]
    %v125 = vld [vmem:[%s1 + $0x2a0] sm:$0xff]
    %v126 = vld [vmem:[%s1 + $0x2a8] sm:$0xff]
    %v127 = vld [vmem:[%s1 + $0x2b0] sm:$0xff]
    %v128 = vld [vmem:[%s1 + $0x2b8] sm:$0xff]
    %v129 = vld [vmem:[%s1 + $0x2c0] sm:$0xff]
    %v130 = vld [vmem:[%s1 + $0x2c8] sm:$0xff]
    %v131 = vld [vmem:[%s1 + $0x2d0] sm:$0xff]
    %v132 = vld [vmem:[%s1 + $0x2d8] sm:$0xff]
    %v133 = vld [vmem:[%s1 + $0x2e0] sm:$0xff]
    %v134 = vld [vmem:[%s1 + $0x2e8] sm:$0xff]
    %v135 = vld [vmem:[%s1 + $0x2f0] sm:$0xff]
    %v136 = vld [vmem:[%s1 + $0x2f8] sm:$0xff]
    %v137 = vld [vmem:[%s1 + $0x300] sm:$0xff]
    %v138 = vld [vmem:[%s1 + $0x308] sm:$0xff]
    %v139 = vld [vmem:[%s2] sm:$0x1]
    %v141 = vlaneseq
    %v142 = vshrl.u32 %v141, 7
    %v143 = vsub.s32 0, %v142
    %v144 = vrot.slane %v139, %v143
    %v148 = vcombine.high %v39, %v39
    %v150 = vunpack.c.l.s4 1983009808
    %v151 = vunpack.c.0.s8 %v150
    %v152 = vlaneseq
    %v153 = vshrl.u32 %v152, 7
    %v154 = vsub.s32 %v151, %v153
    %v155 = vrot.slane %v39, %v154
    %v157 = vunpack.c.l.s4 1983009808
    %v158 = vunpack.c.0.s8 %v157
    %v159 = vlaneseq
    %v160 = vshrl.u32 %v159, 7
    %v161 = vsub.s32 %v158, %v160
    %v162 = vrot.slane %v148, %v161
    %v163 = vcombine.high %v155, %v155
    %v164 = vcombine.high %v162, %v162
    %v165 = vcombine.high %v40, %v40
    %v167 = vunpack.c.l.s4 1983009808
    %v168 = vunpack.c.0.s8 %v167
    %v169 = vlaneseq
    %v170 = vshrl.u32 %v169, 7
    %v171 = vsub.s32 %v168, %v170
    %v172 = vrot.slane %v40, %v171
    %v174 = vunpack.c.l.s4 1983009808
    %v175 = vunpack.c.0.s8 %v174
    %v176 = vlaneseq
    %v177 = vshrl.u32 %v176, 7
    %v178 = vsub.s32 %v175, %v177
    %v179 = vrot.slane %v165, %v178
    %v180 = vcombine.high %v172, %v172
    %vm187 = vcmask 130048
    %v188 = vsel %vm187, %v179, 0
    %190 = vmatprep.subr.mxu0 0.0
    %191 = vmatpush1.msra.mxu0 %v56
    %192 = vmatprep.subr.mxu0 0.0
    %193 = vmatpush1.msra.mxu0 %v55
    %194 = vmatprep.subr.mxu0 0.0
    %195 = vmatpush1.msra.mxu0 %v54
    %196 = vmatprep.subr.mxu0 0.0
    %197 = vmatpush1.msra.mxu0 %v53
    %198 = vmatprep.subr.mxu0 0.0
    %199 = vmatpush1.msra.mxu0 %v52
    %200 = vmatprep.subr.mxu0 0.0
    %201 = vmatpush1.msra.mxu0 %v51
    %202 = vmatprep.subr.mxu0 0.0
    %203 = vmatpush1.msra.mxu0 %v50
    %204 = vmatprep.subr.mxu0 0.0
    %205 = vmatpush1.msra.mxu0 %v49
    %206 = vmatprep.subr.mxu0 0.0
    %207 = vmatpush1.msra.mxu0 %v48
    %208 = vmatprep.subr.mxu0 0.0
    %209 = vmatpush1.msra.mxu0 %v47
    %210 = vmatprep.subr.mxu0 0.0
    %211 = vmatpush1.msra.mxu0 %v46
    %212 = vmatprep.subr.mxu0 0.0
    %213 = vmatpush1.msra.mxu0 %v45
    %214 = vmatprep.subr.mxu0 0.0
    %215 = vmatpush1.msra.mxu0 %v44
    %216 = vmatprep.subr.mxu0 0.0
    %217 = vmatpush1.msra.mxu0 %v43
    %218 = vmatprep.subr.mxu0 0.0
    %219 = vmatpush1.msra.mxu0 %v42
    %220 = vmatprep.subr.mxu0 0.0
    %221 = vmatpush1.msra.mxu0 %v41
    %222 = vmatprep.subr.mxu0 0.0
    %223 = vmatpush2.msra.mxu0 %v72
    %224 = vmatprep.subr.mxu0 0.0
    %225 = vmatpush2.msra.mxu0 %v71
    %226 = vmatprep.subr.mxu0 0.0
    %227 = vmatpush2.msra.mxu0 %v70
    %228 = vmatprep.subr.mxu0 0.0
    %229 = vmatpush2.msra.mxu0 %v69
    %230 = vmatprep.subr.mxu0 0.0
    %231 = vmatpush2.msra.mxu0 %v68
    %232 = vmatprep.subr.mxu0 0.0
    %233 = vmatpush2.msra.mxu0 %v67
    %234 = vmatprep.subr.mxu0 0.0
    %235 = vmatpush2.msra.mxu0 %v66
    %236 = vmatprep.subr.mxu0 0.0
    %237 = vmatpush2.msra.mxu0 %v65
    %238 = vmatprep.subr.mxu0 0.0
    %239 = vmatpush2.msra.mxu0 %v64
    %240 = vmatprep.subr.mxu0 0.0
    %241 = vmatpush2.msra.mxu0 %v63
    %242 = vmatprep.subr.mxu0 0.0
    %243 = vmatpush2.msra.mxu0 %v62
    %244 = vmatprep.subr.mxu0 0.0
    %245 = vmatpush2.msra.mxu0 %v61
    %246 = vmatprep.subr.mxu0 0.0
    %247 = vmatpush2.msra.mxu0 %v60
    %248 = vmatprep.subr.mxu0 0.0
    %249 = vmatpush2.msra.mxu0 %v59
    %250 = vmatprep.subr.mxu0 0.0
    %251 = vmatpush2.msra.mxu0 %v58
    %252 = vmatprep.subr.mxu0 0.0
    %253 = vmatpush2.msra.mxu0 %v57
    %254 = vmatprep.mubr.f32.mxu0 %v163
    %255 = vmatmul.mubr.f32.gmra.mxu0 %v155
    %v256 = vpop.f32.mrf.mxu0
    %v257 = vadd.f32 %v144, %v256
    %v258 = vpop.f32.mrf.mxu0
    %259 = vdwg.mxu0
    %260 = vmatprep.subr.mxu0 0.0
    %261 = vmatpush1.msra.mxu0 %v88
    %262 = vmatprep.subr.mxu0 0.0
    %263 = vmatpush1.msra.mxu0 %v87
    %264 = vmatprep.subr.mxu0 0.0
    %265 = vmatpush1.msra.mxu0 %v86
    %266 = vmatprep.subr.mxu0 0.0
    %267 = vmatpush1.msra.mxu0 %v85
    %268 = vmatprep.subr.mxu0 0.0
    %269 = vmatpush1.msra.mxu0 %v84
    %270 = vmatprep.subr.mxu0 0.0
    %271 = vmatpush1.msra.mxu0 %v83
    %272 = vmatprep.subr.mxu0 0.0
    %273 = vmatpush1.msra.mxu0 %v82
    %274 = vmatprep.subr.mxu0 0.0
    %275 = vmatpush1.msra.mxu0 %v81
    %276 = vmatprep.subr.mxu0 0.0
    %277 = vmatpush1.msra.mxu0 %v80
    %278 = vmatprep.subr.mxu0 0.0
    %279 = vmatpush1.msra.mxu0 %v79
    %280 = vmatprep.subr.mxu0 0.0
    %281 = vmatpush1.msra.mxu0 %v78
    %282 = vmatprep.subr.mxu0 0.0
    %283 = vmatpush1.msra.mxu0 %v77
    %284 = vmatprep.subr.mxu0 0.0
    %285 = vmatpush1.msra.mxu0 %v76
    %286 = vmatprep.subr.mxu0 0.0
    %287 = vmatpush1.msra.mxu0 %v75
    %288 = vmatprep.subr.mxu0 0.0
    %289 = vmatpush1.msra.mxu0 %v74
    %290 = vmatprep.subr.mxu0 0.0
    %291 = vmatpush1.msra.mxu0 %v73
    %292 = vmatprep.subr.mxu0 0.0
    %293 = vmatpush2.msra.mxu0 %v104
    %294 = vmatprep.subr.mxu0 0.0
    %295 = vmatpush2.msra.mxu0 %v103
    %296 = vmatprep.subr.mxu0 0.0
    %297 = vmatpush2.msra.mxu0 %v102
    %298 = vmatprep.subr.mxu0 0.0
    %299 = vmatpush2.msra.mxu0 %v101
    %300 = vmatprep.subr.mxu0 0.0
    %301 = vmatpush2.msra.mxu0 %v100
    %302 = vmatprep.subr.mxu0 0.0
    %303 = vmatpush2.msra.mxu0 %v99
    %304 = vmatprep.subr.mxu0 0.0
    %305 = vmatpush2.msra.mxu0 %v98
    %306 = vmatprep.subr.mxu0 0.0
    %307 = vmatpush2.msra.mxu0 %v97
    %308 = vmatprep.subr.mxu0 0.0
    %309 = vmatpush2.msra.mxu0 %v96
    %310 = vmatprep.subr.mxu0 0.0
    %311 = vmatpush2.msra.mxu0 %v95
    %312 = vmatprep.subr.mxu0 0.0
    %313 = vmatpush2.msra.mxu0 %v94
    %314 = vmatprep.subr.mxu0 0.0
    %315 = vmatpush2.msra.mxu0 %v93
    %316 = vmatprep.subr.mxu0 0.0
    %317 = vmatpush2.msra.mxu0 %v92
    %318 = vmatprep.subr.mxu0 0.0
    %319 = vmatpush2.msra.mxu0 %v91
    %320 = vmatprep.subr.mxu0 0.0
    %321 = vmatpush2.msra.mxu0 %v90
    %322 = vmatprep.subr.mxu0 0.0
    %323 = vmatpush2.msra.mxu0 %v89
    %324 = vmatprep.mubr.f32.mxu0 %v164
    %325 = vmatmul.mubr.f32.gmra.mxu0 %v162
    %v326 = vpop.f32.mrf.mxu0
    %v327 = vadd.f32 %v257, %v326
    %v328 = vpop.f32.mrf.mxu0
    %329 = vdwg.mxu0
    %330 = vmatprep.subr.mxu0 0.0
    %331 = vmatpush1.msra.mxu0 %v120
    %332 = vmatprep.subr.mxu0 0.0
    %333 = vmatpush1.msra.mxu0 %v119
    %334 = vmatprep.subr.mxu0 0.0
    %335 = vmatpush1.msra.mxu0 %v118
    %336 = vmatprep.subr.mxu0 0.0
    %337 = vmatpush1.msra.mxu0 %v117
    %338 = vmatprep.subr.mxu0 0.0
    %339 = vmatpush1.msra.mxu0 %v116
    %340 = vmatprep.subr.mxu0 0.0
    %341 = vmatpush1.msra.mxu0 %v115
    %342 = vmatprep.subr.mxu0 0.0
    %343 = vmatpush1.msra.mxu0 %v114
    %344 = vmatprep.subr.mxu0 0.0
    %345 = vmatpush1.msra.mxu0 %v113
    %346 = vmatprep.subr.mxu0 0.0
    %347 = vmatpush1.msra.mxu0 %v112
    %348 = vmatprep.subr.mxu0 0.0
    %349 = vmatpush1.msra.mxu0 %v111
    %350 = vmatprep.subr.mxu0 0.0
    %351 = vmatpush1.msra.mxu0 %v110
    %352 = vmatprep.subr.mxu0 0.0
    %353 = vmatpush1.msra.mxu0 %v109
    %354 = vmatprep.subr.mxu0 0.0
    %355 = vmatpush1.msra.mxu0 %v108
    %356 = vmatprep.subr.mxu0 0.0
    %357 = vmatpush1.msra.mxu0 %v107
    %358 = vmatprep.subr.mxu0 0.0
    %359 = vmatpush1.msra.mxu0 %v106
    %360 = vmatprep.subr.mxu0 0.0
    %361 = vmatpush1.msra.mxu0 %v105
    %362 = vmatprep.subr.mxu0 0.0
    %363 = vmatpush2.msra.mxu0 %v136
    %364 = vmatprep.subr.mxu0 0.0
    %365 = vmatpush2.msra.mxu0 %v135
    %366 = vmatprep.subr.mxu0 0.0
    %367 = vmatpush2.msra.mxu0 %v134
    %368 = vmatprep.subr.mxu0 0.0
    %369 = vmatpush2.msra.mxu0 %v133
    %370 = vmatprep.subr.mxu0 0.0
    %371 = vmatpush2.msra.mxu0 %v132
    %372 = vmatprep.subr.mxu0 0.0
    %373 = vmatpush2.msra.mxu0 %v131
    %374 = vmatprep.subr.mxu0 0.0
    %375 = vmatpush2.msra.mxu0 %v130
    %376 = vmatprep.subr.mxu0 0.0
    %377 = vmatpush2.msra.mxu0 %v129
    %378 = vmatprep.subr.mxu0 0.0
    %379 = vmatpush2.msra.mxu0 %v128
    %380 = vmatprep.subr.mxu0 0.0
    %381 = vmatpush2.msra.mxu0 %v127
    %382 = vmatprep.subr.mxu0 0.0
    %383 = vmatpush2.msra.mxu0 %v126
    %384 = vmatprep.subr.mxu0 0.0
    %385 = vmatpush2.msra.mxu0 %v125
    %386 = vmatprep.subr.mxu0 0.0
    %387 = vmatpush2.msra.mxu0 %v124
    %388 = vmatprep.subr.mxu0 0.0
    %389 = vmatpush2.msra.mxu0 %v123
    %390 = vmatprep.subr.mxu0 0.0
    %391 = vmatpush2.msra.mxu0 %v122
    %392 = vmatprep.subr.mxu0 0.0
    %393 = vmatpush2.msra.mxu0 %v121
    %394 = vmatprep.mubr.f32.mxu0 %v180
    %395 = vmatmul.mubr.f32.gmra.mxu0 %v172
    %v396 = vpop.f32.mrf.mxu0
    %v397 = vadd.f32 %v327, %v396
    %v398 = vpop.f32.mrf.mxu0
    %399 = vdwg.mxu0
    %400 = vmatprep.subr.mxu0 0.0
    %401 = vmatpush1.msra.mxu0 0.0
    %402 = vmatprep.subr.mxu0 0.0
    %403 = vmatpush1.msra.mxu0 0.0
    %404 = vmatprep.subr.mxu0 0.0
    %405 = vmatpush1.msra.mxu0 0.0
    %406 = vmatprep.subr.mxu0 0.0
    %407 = vmatpush1.msra.mxu0 0.0
    %408 = vmatprep.subr.mxu0 0.0
    %409 = vmatpush1.msra.mxu0 0.0
    %410 = vmatprep.subr.mxu0 0.0
    %411 = vmatpush1.msra.mxu0 0.0
    %412 = vmatprep.subr.mxu0 0.0
    %413 = vmatpush1.msra.mxu0 0.0
    %414 = vmatprep.subr.mxu0 0.0
    %415 = vmatpush1.msra.mxu0 0.0
    %416 = vmatprep.subr.mxu0 0.0
    %417 = vmatpush1.msra.mxu0 0.0
    %418 = vmatprep.subr.mxu0 0.0
    %419 = vmatpush1.msra.mxu0 0.0
    %420 = vmatprep.subr.mxu0 0.0
    %421 = vmatpush1.msra.mxu0 0.0
    %422 = vmatprep.subr.mxu0 0.0
    %423 = vmatpush1.msra.mxu0 0.0
    %424 = vmatprep.subr.mxu0 0.0
    %425 = vmatpush1.msra.mxu0 0.0
    %426 = vmatprep.subr.mxu0 0.0
    %427 = vmatpush1.msra.mxu0 0.0
    %428 = vmatprep.subr.mxu0 0.0
    %429 = vmatpush1.msra.mxu0 %v138
    %430 = vmatprep.subr.mxu0 0.0
    %431 = vmatpush1.msra.mxu0 %v137
    %432 = vmatprep.subr.mxu0 0.0
    %433 = vmatpush2.msra.mxu0 0.0
    %434 = vmatprep.subr.mxu0 0.0
    %435 = vmatpush2.msra.mxu0 0.0
    %436 = vmatprep.subr.mxu0 0.0
    %437 = vmatpush2.msra.mxu0 0.0
    %438 = vmatprep.subr.mxu0 0.0
    %439 = vmatpush2.msra.mxu0 0.0
    %440 = vmatprep.subr.mxu0 0.0
    %441 = vmatpush2.msra.mxu0 0.0
    %442 = vmatprep.subr.mxu0 0.0
    %443 = vmatpush2.msra.mxu0 0.0
    %444 = vmatprep.subr.mxu0 0.0
    %445 = vmatpush2.msra.mxu0 0.0
    %446 = vmatprep.subr.mxu0 0.0
    %447 = vmatpush2.msra.mxu0 0.0
    %448 = vmatprep.subr.mxu0 0.0
    %449 = vmatpush2.msra.mxu0 0.0
    %450 = vmatprep.subr.mxu0 0.0
    %451 = vmatpush2.msra.mxu0 0.0
    %452 = vmatprep.subr.mxu0 0.0
    %453 = vmatpush2.msra.mxu0 0.0
    %454 = vmatprep.subr.mxu0 0.0
    %455 = vmatpush2.msra.mxu0 0.0
    %456 = vmatprep.subr.mxu0 0.0
    %457 = vmatpush2.msra.mxu0 0.0
    %458 = vmatprep.subr.mxu0 0.0
    %459 = vmatpush2.msra.mxu0 0.0
    %460 = vmatprep.subr.mxu0 0.0
    %461 = vmatpush2.msra.mxu0 0.0
    %462 = vmatprep.subr.mxu0 0.0
    %463 = vmatpush2.msra.mxu0 0.0
    %464 = vmatprep.mubr.f32.mxu0 0.0
    %465 = vmatmul.mubr.f32.gmra.mxu0 %v188
    %v466 = vpop.f32.mrf.mxu0
    %v467 = vadd.f32 %v397, %v466
    %v468 = vpop.f32.mrf.mxu0
    %469 = vdwg.mxu0
    %v470 = vmul.f32 %v467, %v467
    %v471 = vld [vmem:[%s3] sm:$0xff]
    %v472 = vld [vmem:[%s3 + $0x8] sm:$0xff]
    %v473 = vld [vmem:[%s3 + $0x10] sm:$0xff]
    %v474 = vld [vmem:[%s3 + $0x18] sm:$0xff]
    %v475 = vld [vmem:[%s3 + $0x20] sm:$0xf]
    %v476 = vld [vmem:[%s4] sm:$0x1]
    %v478 = vlaneseq
    %v479 = vshrl.u32 %v478, 7
    %v480 = vsub.s32 0, %v479
    %v481 = vrot.slane %v476, %v480
    %vm483 = vcmask 293888
    %v485 = vsel %vm483, %v470, 0
    %vm487 = vcmask 1043456
    %v489 = vsel %vm487, %v475, 0
    %491 = vmatprep.subr.mxu0 0.0
    %492 = vmatpush1.msra.mxu0 0.0
    %493 = vmatprep.subr.mxu0 0.0
    %494 = vmatpush1.msra.mxu0 0.0
    %495 = vmatprep.subr.mxu0 0.0
    %496 = vmatpush1.msra.mxu0 0.0
    %497 = vmatprep.subr.mxu0 0.0
    %498 = vmatpush1.msra.mxu0 0.0
    %499 = vmatprep.subr.mxu0 0.0
    %500 = vmatpush1.msra.mxu0 0.0
    %501 = vmatprep.subr.mxu0 0.0
    %502 = vmatpush1.msra.mxu0 0.0
    %503 = vmatprep.subr.mxu0 0.0
    %504 = vmatpush1.msra.mxu0 0.0
    %505 = vmatprep.subr.mxu0 0.0
    %506 = vmatpush1.msra.mxu0 0.0
    %507 = vmatprep.subr.mxu0 0.0
    %508 = vmatpush1.msra.mxu0 0.0
    %509 = vmatprep.subr.mxu0 0.0
    %510 = vmatpush1.msra.mxu0 0.0
    %511 = vmatprep.subr.mxu0 0.0
    %512 = vmatpush1.msra.mxu0 0.0
    %513 = vmatprep.subr.mxu0 0.0
    %514 = vmatpush1.msra.mxu0 %v489
    %515 = vmatprep.subr.mxu0 0.0
    %516 = vmatpush1.msra.mxu0 %v474
    %517 = vmatprep.subr.mxu0 0.0
    %518 = vmatpush1.msra.mxu0 %v473
    %519 = vmatprep.subr.mxu0 0.0
    %520 = vmatpush1.msra.mxu0 %v472
    %521 = vmatprep.subr.mxu0 0.0
    %522 = vmatpush1.msra.mxu0 %v471
    %523 = vmatprep.subr.mxu0 0.0
    %524 = vmatpush2.msra.mxu0 0.0
    %525 = vmatprep.subr.mxu0 0.0
    %526 = vmatpush2.msra.mxu0 0.0
    %527 = vmatprep.subr.mxu0 0.0
    %528 = vmatpush2.msra.mxu0 0.0
    %529 = vmatprep.subr.mxu0 0.0
    %530 = vmatpush2.msra.mxu0 0.0
    %531 = vmatprep.subr.mxu0 0.0
    %532 = vmatpush2.msra.mxu0 0.0
    %533 = vmatprep.subr.mxu0 0.0
    %534 = vmatpush2.msra.mxu0 0.0
    %535 = vmatprep.subr.mxu0 0.0
    %536 = vmatpush2.msra.mxu0 0.0
    %537 = vmatprep.subr.mxu0 0.0
    %538 = vmatpush2.msra.mxu0 0.0
    %539 = vmatprep.subr.mxu0 0.0
    %540 = vmatpush2.msra.mxu0 0.0
    %541 = vmatprep.subr.mxu0 0.0
    %542 = vmatpush2.msra.mxu0 0.0
    %543 = vmatprep.subr.mxu0 0.0
    %544 = vmatpush2.msra.mxu0 0.0
    %545 = vmatprep.subr.mxu0 0.0
    %546 = vmatpush2.msra.mxu0 0.0
    %547 = vmatprep.subr.mxu0 0.0
    %548 = vmatpush2.msra.mxu0 0.0
    %549 = vmatprep.subr.mxu0 0.0
    %550 = vmatpush2.msra.mxu0 0.0
    %551 = vmatprep.subr.mxu0 0.0
    %552 = vmatpush2.msra.mxu0 0.0
    %553 = vmatprep.subr.mxu0 0.0
    %554 = vmatpush2.msra.mxu0 0.0
    %555 = vmatprep.mubr.f32.mxu0 0.0
    %556 = vmatmul.mubr.f32.gmra.mxu0 %v485
    %v557 = vpop.f32.mrf.mxu0
    %v558 = vadd.f32 %v481, %v557
    %v559 = vpop.f32.mrf.mxu0
    %560 = vdwg.mxu0
    %v561 = vmul.f32 %v558, %v558
    %v562 = vld [vmem:[%s5] sm:$0xff]
    %v563 = vld [vmem:[%s5 + $0x8] sm:$0xff]
    %v564 = vld [vmem:[%s5 + $0x10] sm:$0xff]
    %v565 = vld [vmem:[%s5 + $0x18] sm:$0xff]
    %v566 = vld [vmem:[%s5 + $0x20] sm:$0xf]
    %v567 = vld [vmem:[%s6] sm:$0x1]
    %v569 = vlaneseq
    %v570 = vshrl.u32 %v569, 7
    %v571 = vsub.s32 0, %v570
    %v572 = vrot.slane %v567, %v571
    %v575 = vsel %vm483, %v561, 0
    %v578 = vsel %vm487, %v566, 0
    %580 = vmatprep.subr.mxu0 0.0
    %581 = vmatpush1.msra.mxu0 0.0
    %582 = vmatprep.subr.mxu0 0.0
    %583 = vmatpush1.msra.mxu0 0.0
    %584 = vmatprep.subr.mxu0 0.0
    %585 = vmatpush1.msra.mxu0 0.0
    %586 = vmatprep.subr.mxu0 0.0
    %587 = vmatpush1.msra.mxu0 0.0
    %588 = vmatprep.subr.mxu0 0.0
    %589 = vmatpush1.msra.mxu0 0.0
    %590 = vmatprep.subr.mxu0 0.0
    %591 = vmatpush1.msra.mxu0 0.0
    %592 = vmatprep.subr.mxu0 0.0
    %593 = vmatpush1.msra.mxu0 0.0
    %594 = vmatprep.subr.mxu0 0.0
    %595 = vmatpush1.msra.mxu0 0.0
    %596 = vmatprep.subr.mxu0 0.0
    %597 = vmatpush1.msra.mxu0 0.0
    %598 = vmatprep.subr.mxu0 0.0
    %599 = vmatpush1.msra.mxu0 0.0
    %600 = vmatprep.subr.mxu0 0.0
    %601 = vmatpush1.msra.mxu0 0.0
    %602 = vmatprep.subr.mxu0 0.0
    %603 = vmatpush1.msra.mxu0 %v578
    %604 = vmatprep.subr.mxu0 0.0
    %605 = vmatpush1.msra.mxu0 %v565
    %606 = vmatprep.subr.mxu0 0.0
    %607 = vmatpush1.msra.mxu0 %v564
    %608 = vmatprep.subr.mxu0 0.0
    %609 = vmatpush1.msra.mxu0 %v563
    %610 = vmatprep.subr.mxu0 0.0
    %611 = vmatpush1.msra.mxu0 %v562
    %612 = vmatprep.subr.mxu0 0.0
    %613 = vmatpush2.msra.mxu0 0.0
    %614 = vmatprep.subr.mxu0 0.0
    %615 = vmatpush2.msra.mxu0 0.0
    %616 = vmatprep.subr.mxu0 0.0
    %617 = vmatpush2.msra.mxu0 0.0
    %618 = vmatprep.subr.mxu0 0.0
    %619 = vmatpush2.msra.mxu0 0.0
    %620 = vmatprep.subr.mxu0 0.0
    %621 = vmatpush2.msra.mxu0 0.0
    %622 = vmatprep.subr.mxu0 0.0
    %623 = vmatpush2.msra.mxu0 0.0
    %624 = vmatprep.subr.mxu0 0.0
    %625 = vmatpush2.msra.mxu0 0.0
    %626 = vmatprep.subr.mxu0 0.0
    %627 = vmatpush2.msra.mxu0 0.0
    %628 = vmatprep.subr.mxu0 0.0
    %629 = vmatpush2.msra.mxu0 0.0
    %630 = vmatprep.subr.mxu0 0.0
    %631 = vmatpush2.msra.mxu0 0.0
    %632 = vmatprep.subr.mxu0 0.0
    %633 = vmatpush2.msra.mxu0 0.0
    %634 = vmatprep.subr.mxu0 0.0
    %635 = vmatpush2.msra.mxu0 0.0
    %636 = vmatprep.subr.mxu0 0.0
    %637 = vmatpush2.msra.mxu0 0.0
    %638 = vmatprep.subr.mxu0 0.0
    %639 = vmatpush2.msra.mxu0 0.0
    %640 = vmatprep.subr.mxu0 0.0
    %641 = vmatpush2.msra.mxu0 0.0
    %642 = vmatprep.subr.mxu0 0.0
    %643 = vmatpush2.msra.mxu0 0.0
    %644 = vmatprep.mubr.f32.mxu0 0.0
    %645 = vmatmul.mubr.f32.gmra.mxu0 %v575
    %v646 = vpop.f32.mrf.mxu0
    %v647 = vadd.f32 %v572, %v646
    %v648 = vpop.f32.mrf.mxu0
    %649 = vdwg.mxu0
    %v650 = vmul.f32 %v647, %v647
    %v651 = vld [vmem:[%s7] sm:$0xff]
    %v652 = vld [vmem:[%s7 + $0x8] sm:$0xff]
    %v653 = vld [vmem:[%s8] sm:$0x1]
    %v655 = vlaneseq
    %v656 = vshrl.u32 %v655, 7
    %v657 = vsub.s32 0, %v656
    %v658 = vrot.slane %v653, %v657
    %v661 = vsel %vm187, %v650, 0
    %663 = vmatprep.subr.mxu0 0.0
    %664 = vmatpush1.msra.mxu0 0.0
    %665 = vmatprep.subr.mxu0 0.0
    %666 = vmatpush1.msra.mxu0 0.0
    %667 = vmatprep.subr.mxu0 0.0
    %668 = vmatpush1.msra.mxu0 0.0
    %669 = vmatprep.subr.mxu0 0.0
    %670 = vmatpush1.msra.mxu0 0.0
    %671 = vmatprep.subr.mxu0 0.0
    %672 = vmatpush1.msra.mxu0 0.0
    %673 = vmatprep.subr.mxu0 0.0
    %674 = vmatpush1.msra.mxu0 0.0
    %675 = vmatprep.subr.mxu0 0.0
    %676 = vmatpush1.msra.mxu0 0.0
    %677 = vmatprep.subr.mxu0 0.0
    %678 = vmatpush1.msra.mxu0 0.0
    %679 = vmatprep.subr.mxu0 0.0
    %680 = vmatpush1.msra.mxu0 0.0
    %681 = vmatprep.subr.mxu0 0.0
    %682 = vmatpush1.msra.mxu0 0.0
    %683 = vmatprep.subr.mxu0 0.0
    %684 = vmatpush1.msra.mxu0 0.0
    %685 = vmatprep.subr.mxu0 0.0
    %686 = vmatpush1.msra.mxu0 0.0
    %687 = vmatprep.subr.mxu0 0.0
    %688 = vmatpush1.msra.mxu0 0.0
    %689 = vmatprep.subr.mxu0 0.0
    %690 = vmatpush1.msra.mxu0 0.0
    %691 = vmatprep.subr.mxu0 0.0
    %692 = vmatpush1.msra.mxu0 %v652
    %693 = vmatprep.subr.mxu0 0.0
    %694 = vmatpush1.msra.mxu0 %v651
    %695 = vmatprep.subr.mxu0 0.0
    %696 = vmatpush2.msra.mxu0 0.0
    %697 = vmatprep.subr.mxu0 0.0
    %698 = vmatpush2.msra.mxu0 0.0
    %699 = vmatprep.subr.mxu0 0.0
    %700 = vmatpush2.msra.mxu0 0.0
    %701 = vmatprep.subr.mxu0 0.0
    %702 = vmatpush2.msra.mxu0 0.0
    %703 = vmatprep.subr.mxu0 0.0
    %704 = vmatpush2.msra.mxu0 0.0
    %705 = vmatprep.subr.mxu0 0.0
    %706 = vmatpush2.msra.mxu0 0.0
    %707 = vmatprep.subr.mxu0 0.0
    %708 = vmatpush2.msra.mxu0 0.0
    %709 = vmatprep.subr.mxu0 0.0
    %710 = vmatpush2.msra.mxu0 0.0
    %711 = vmatprep.subr.mxu0 0.0
    %712 = vmatpush2.msra.mxu0 0.0
    %713 = vmatprep.subr.mxu0 0.0
    %714 = vmatpush2.msra.mxu0 0.0
    %715 = vmatprep.subr.mxu0 0.0
    %716 = vmatpush2.msra.mxu0 0.0
    %717 = vmatprep.subr.mxu0 0.0
    %718 = vmatpush2.msra.mxu0 0.0
    %719 = vmatprep.subr.mxu0 0.0
    %720 = vmatpush2.msra.mxu0 0.0
    %721 = vmatprep.subr.mxu0 0.0
    %722 = vmatpush2.msra.mxu0 0.0
    %723 = vmatprep.subr.mxu0 0.0
    %724 = vmatpush2.msra.mxu0 0.0
    %725 = vmatprep.subr.mxu0 0.0
    %726 = vmatpush2.msra.mxu0 0.0
    %727 = vmatprep.mubr.f32.mxu0 0.0
    %728 = vmatmul.mubr.f32.gmra.mxu0 %v661
    %v729 = vpop.f32.mrf.mxu0
    %v730 = vadd.f32 %v658, %v729
    %v731 = vpop.f32.mrf.mxu0
    %732 = vdwg.mxu0
    %v733 = vmul.f32 %v730, %v730
    %v734 = vld [vmem:[%s9] sm:$0xff]
    %v735 = vld [vmem:[%s9 + $0x8] sm:$0xff]
    %v736 = vld [vmem:[%s10] sm:$0x1]
    %v738 = vlaneseq
    %v739 = vshrl.u32 %v738, 7
    %v740 = vsub.s32 0, %v739
    %v741 = vrot.slane %v736, %v740
    %v744 = vsel %vm187, %v733, 0
    %746 = vmatprep.subr.mxu0 0.0
    %747 = vmatpush1.msra.mxu0 0.0
    %748 = vmatprep.subr.mxu0 0.0
    %749 = vmatpush1.msra.mxu0 0.0
    %750 = vmatprep.subr.mxu0 0.0
    %751 = vmatpush1.msra.mxu0 0.0
    %752 = vmatprep.subr.mxu0 0.0
    %753 = vmatpush1.msra.mxu0 0.0
    %754 = vmatprep.subr.mxu0 0.0
    %755 = vmatpush1.msra.mxu0 0.0
    %756 = vmatprep.subr.mxu0 0.0
    %757 = vmatpush1.msra.mxu0 0.0
    %758 = vmatprep.subr.mxu0 0.0
    %759 = vmatpush1.msra.mxu0 0.0
    %760 = vmatprep.subr.mxu0 0.0
    %761 = vmatpush1.msra.mxu0 0.0
    %762 = vmatprep.subr.mxu0 0.0
    %763 = vmatpush1.msra.mxu0 0.0
    %764 = vmatprep.subr.mxu0 0.0
    %765 = vmatpush1.msra.mxu0 0.0
    %766 = vmatprep.subr.mxu0 0.0
    %767 = vmatpush1.msra.mxu0 0.0
    %768 = vmatprep.subr.mxu0 0.0
    %769 = vmatpush1.msra.mxu0 0.0
    %770 = vmatprep.subr.mxu0 0.0
    %771 = vmatpush1.msra.mxu0 0.0
    %772 = vmatprep.subr.mxu0 0.0
    %773 = vmatpush1.msra.mxu0 0.0
    %774 = vmatprep.subr.mxu0 0.0
    %775 = vmatpush1.msra.mxu0 %v735
    %776 = vmatprep.subr.mxu0 0.0
    %777 = vmatpush1.msra.mxu0 %v734
    %778 = vmatprep.subr.mxu0 0.0
    %779 = vmatpush2.msra.mxu0 0.0
    %780 = vmatprep.subr.mxu0 0.0
    %781 = vmatpush2.msra.mxu0 0.0
    %782 = vmatprep.subr.mxu0 0.0
    %783 = vmatpush2.msra.mxu0 0.0
    %784 = vmatprep.subr.mxu0 0.0
    %785 = vmatpush2.msra.mxu0 0.0
    %786 = vmatprep.subr.mxu0 0.0
    %787 = vmatpush2.msra.mxu0 0.0
    %788 = vmatprep.subr.mxu0 0.0
    %789 = vmatpush2.msra.mxu0 0.0
    %790 = vmatprep.subr.mxu0 0.0
    %791 = vmatpush2.msra.mxu0 0.0
    %792 = vmatprep.subr.mxu0 0.0
    %793 = vmatpush2.msra.mxu0 0.0
    %794 = vmatprep.subr.mxu0 0.0
    %795 = vmatpush2.msra.mxu0 0.0
    %796 = vmatprep.subr.mxu0 0.0
    %797 = vmatpush2.msra.mxu0 0.0
    %798 = vmatprep.subr.mxu0 0.0
    %799 = vmatpush2.msra.mxu0 0.0
    %800 = vmatprep.subr.mxu0 0.0
    %801 = vmatpush2.msra.mxu0 0.0
    %802 = vmatprep.subr.mxu0 0.0
    %803 = vmatpush2.msra.mxu0 0.0
    %804 = vmatprep.subr.mxu0 0.0
    %805 = vmatpush2.msra.mxu0 0.0
    %806 = vmatprep.subr.mxu0 0.0
    %807 = vmatpush2.msra.mxu0 0.0
    %808 = vmatprep.subr.mxu0 0.0
    %809 = vmatpush2.msra.mxu0 0.0
    %810 = vmatprep.mubr.f32.mxu0 0.0
    %811 = vmatmul.mubr.f32.gmra.mxu0 %v744
    %v812 = vpop.f32.mrf.mxu0
    %v813 = vadd.f32 %v741, %v812
    %v814 = vpop.f32.mrf.mxu0
    %815 = vdwg.mxu0
    %vm816 = vcmask 74752
    %v817 = vsel %vm816, %v813, -inf
    %818 = vmax.xlane.f32.xlu0 %v817
    %v819 = vpop.xlane.xlu0 %818
    %v820 = vsub.f32 %v813, %v819
    %v821 = vmul.f32 %v820, 1.442695
    %v822 = vpow.pop %v821
    %v823 = vsel %vm816, %v822, 0.0
    %824 = vadd.xlane.f32.xlu0 %v823
    %v825 = vpop.xlane.xlu0 %824
    %v826 = vlog2.pop %v825
    %v827 = vmul.f32 %v826, 0.6931472
    %v828 = vsub.f32 %v820, %v827
    %829 = vst.msk [vmem:[#allocation2] sm:$0x3] %vm816, %v828
    // Predicated region
    $region46: #{tpu_custom_call.1} parent=1 // pred_check
      _
    $region47: #{tpu_custom_call.1} parent=1 // pred_check_branch
      %831 = sbr.rel (0) target = $region49
    $region48: #{tpu_custom_call.1} parent=1 // pred_region
      %s833 = ssub.s32 32, 32
      %834 = vsyncadd [#allocation3], %s833
      %s836 = sshll.u32 [#allocation2], 4
      %s837 = int_to_ptr.vmem [resolvable:$true] %s836
      %839 = dma.vmem_to_hbm [thread:$0]  %s837, 32, %s11, [#allocation3]
    $region49: #{tpu_custom_call.1} parent=1 // pred_fallthru
      _
    // Predicated region
    $region50: #{tpu_custom_call.1} parent=1 // pred_check
      _
    $region51: #{tpu_custom_call.1} parent=1 // pred_check_branch
      %841 = sbr.rel (0) target = $region53
    $region52: #{tpu_custom_call.1} parent=1 // pred_region
      %842 = dma.done [#allocation3], 32
    $region53: #{tpu_custom_call.1} parent=1 // pred_fallthru
      _
    %843 = vsyncpa [#allocation3], 1

</llo_original>
